<compile_context>
chip_gen: v7x
topology: tpu7x:2x2x1
jax: 0.10.0
libtpu: 0.0.40
codegen_flags: <defaults>
</compile_context>

<pallas_src>
import math

import jax
import jax.numpy as jnp
from jax.experimental import pallas as pl
from jax.experimental.pallas import tpu as pltpu


def _row_tile(m, max_tile=1024):
    """Largest row tile (<= max_tile) dividing m, preferring an even grid of
    at least 2 steps (v7x megacore); falls back to the biggest divisor."""
    cands = (1024, 512, 256, 128, 64, 32, 16, 8)
    for t in cands:
        if t <= max_tile and m % t == 0 and (m // t) >= 2 and (m // t) % 2 == 0:
            return t
    for t in cands:
        if t <= max_tile and m % t == 0:
            return t
    return m


def _layer_scale_d8_kernel(a1_ref, a2_ref, b1_ref, b2_ref, e_ref,
                           g1_ref, g2_ref, g3_ref, g4_ref, ge_ref,
                           o1_ref, o2_ref, o3_ref, o4_ref, oe_ref):
    # Plain VPU broadcast-multiplies; exactly one read and one write per element.
    o1_ref[...] = (a1_ref[...] * g1_ref[...]).astype(o1_ref.dtype)
    o2_ref[...] = (a2_ref[...] * g2_ref[...]).astype(o2_ref.dtype)
    o3_ref[...] = (b1_ref[...] * g3_ref[...]).astype(o3_ref.dtype)
    o4_ref[...] = (b2_ref[...] * g4_ref[...]).astype(o4_ref.dtype)
    oe_ref[...] = (e_ref[...] * ge_ref[...]).astype(oe_ref.dtype)


def layer_scale_d8(xs, alpha_a1, alpha_a2, alpha_b1, alpha_b2, alpha_e):
    """Functional equivalent of LayerScaleD8.forward(xs)."""
    a1, a2, b1, b2, e = xs
    lead = a1.shape[:-1]                       # (B, N)
    m = math.prod(lead)
    c8 = a1.shape[-1]                          # dim // 8
    d4 = alpha_e.shape[-1]                     # dim // 4
    e_inner = e.shape[len(lead):]              # (2, dim//4)
    ce = math.prod(e_inner)                    # dim // 2
    reps = ce // d4

    # Flatten token axes (free, row-major views).
    x1 = [t.reshape(m, c8) for t in (a1, a2, b1, b2)]
    xe = e.reshape(m, ce)

    g1 = [g.reshape(1, c8) for g in (alpha_a1, alpha_a2, alpha_b1, alpha_b2)]
    # Broadcasting alpha_E over (..., 2, dim//4) == tiled [alpha_E, alpha_E] row
    # on the flattened (M, dim//2) layout.
    ge = (jnp.tile(alpha_e, reps) if reps > 1 else alpha_e).reshape(1, ce)

    tm = _row_tile(m)
    grid = (m // tm,)

    row_spec8 = pl.BlockSpec((tm, c8), lambda i: (i, 0))
    row_spece = pl.BlockSpec((tm, ce), lambda i: (i, 0))
    vec_spec8 = pl.BlockSpec((1, c8), lambda i: (0, 0))   # resident scale rows
    vec_spece = pl.BlockSpec((1, ce), lambda i: (0, 0))

    outs = pl.pallas_call(
        _layer_scale_d8_kernel,
        out_shape=tuple(jax.ShapeDtypeStruct((m, c8), t.dtype)
                        for t in (a1, a2, b1, b2))
                  + (jax.ShapeDtypeStruct((m, ce), e.dtype),),
        grid=grid,
        in_specs=[row_spec8] * 4 + [row_spece] + [vec_spec8] * 4 + [vec_spece],
        out_specs=[row_spec8] * 4 + [row_spece],
        compiler_params=pltpu.CompilerParams(dimension_semantics=("parallel",)),
    )(*x1, xe, *g1, ge)

    oa1, oa2, ob1, ob2, oe = outs
    return (oa1.reshape(a1.shape), oa2.reshape(a2.shape),
            ob1.reshape(b1.shape), ob2.reshape(b2.shape),
            oe.reshape(e.shape))


if __name__ == "__main__":
    # Small shapes consistent with the module: dim % 8 == 0.
    B, N, DIM = 2, 16, 64
    d8, d4 = DIM // 8, DIM // 4

    key = jax.random.PRNGKey(0)
    ka1, ka2, kb1, kb2, ke, kp = jax.random.split(key, 6)
    xs = (
        jax.random.normal(ka1, (B, N, d8), jnp.float32),
        jax.random.normal(ka2, (B, N, d8), jnp.float32),
        jax.random.normal(kb1, (B, N, d8), jnp.float32),
        jax.random.normal(kb2, (B, N, d8), jnp.float32),
        jax.random.normal(ke, (B, N, 2, d4), jnp.float32),
    )

    # LayerScaleD8.__init__ sets alpha_* = init_values * ones; the forward works
    # for any learned values, so use distinct deterministic values to actually
    # exercise the per-irrep scaling (init_values offset + small perturbation).
    init_values = 1e-5
    kpa1, kpa2, kpb1, kpb2, kpe = jax.random.split(kp, 5)
    alpha_a1 = init_values + 0.01 * jax.random.normal(kpa1, (d8,), jnp.float32)
    alpha_a2 = init_values + 0.01 * jax.random.normal(kpa2, (d8,), jnp.float32)
    alpha_b1 = init_values + 0.01 * jax.random.normal(kpb1, (d8,), jnp.float32)
    alpha_b2 = init_values + 0.01 * jax.random.normal(kpb2, (d8,), jnp.float32)
    alpha_e = init_values + 0.01 * jax.random.normal(kpe, (d4,), jnp.float32)

    fwd = jax.jit(layer_scale_d8)
    outs = fwd(xs, alpha_a1, alpha_a2, alpha_b1, alpha_b2, alpha_e)
    outs = jax.block_until_ready(outs)

    # Pure-JAX reference of the PyTorch forward semantics.
    ref = (alpha_a1 * xs[0], alpha_a2 * xs[1], alpha_b1 * xs[2],
           alpha_b2 * xs[3], alpha_e * xs[4])

    assert len(outs) == 5
    for o, r, x in zip(outs, ref, xs):
        assert o.shape == x.shape, (o.shape, x.shape)
        assert bool(jnp.all(jnp.isfinite(o)))
        assert bool(jnp.allclose(o, r, rtol=1e-6, atol=1e-6))
    print("KERNEL_OK")
</pallas_src>

<mosaic_0001>
module attributes {stable_mosaic.version = 11 : i64} {
  func.func @_layer_scale_d8_kernel(%arg0: i32, %arg1: memref<16x8xf32, #tpu.memory_space<vmem>>, %arg2: memref<16x8xf32, #tpu.memory_space<vmem>>, %arg3: memref<16x8xf32, #tpu.memory_space<vmem>>, %arg4: memref<16x8xf32, #tpu.memory_space<vmem>>, %arg5: memref<16x32xf32, #tpu.memory_space<vmem>>, %arg6: memref<1x8xf32, #tpu.memory_space<vmem>>, %arg7: memref<1x8xf32, #tpu.memory_space<vmem>>, %arg8: memref<1x8xf32, #tpu.memory_space<vmem>>, %arg9: memref<1x8xf32, #tpu.memory_space<vmem>>, %arg10: memref<1x32xf32, #tpu.memory_space<vmem>>, %arg11: memref<16x8xf32, #tpu.memory_space<vmem>>, %arg12: memref<16x8xf32, #tpu.memory_space<vmem>>, %arg13: memref<16x8xf32, #tpu.memory_space<vmem>>, %arg14: memref<16x8xf32, #tpu.memory_space<vmem>>, %arg15: memref<16x32xf32, #tpu.memory_space<vmem>>) attributes {dimension_semantics = [#tpu.dimension_semantics<parallel>], iteration_bounds = array<i64: 2>, scalar_prefetch = 0 : i64, scratch_operands = 0 : i64, tpu.core_type = #tpu.core_type<tc>, window_params = [{transform_indices = @transform_0, window_bounds = array<i64: 16, 8>}, {transform_indices = @transform_1, window_bounds = array<i64: 16, 8>}, {transform_indices = @transform_2, window_bounds = array<i64: 16, 8>}, {transform_indices = @transform_3, window_bounds = array<i64: 16, 8>}, {transform_indices = @transform_4, window_bounds = array<i64: 16, 32>}, {pipeline_mode = #tpu.pipeline_mode<synchronous>, transform_indices = @transform_5, window_bounds = array<i64: 1, 8>}, {pipeline_mode = #tpu.pipeline_mode<synchronous>, transform_indices = @transform_6, window_bounds = array<i64: 1, 8>}, {pipeline_mode = #tpu.pipeline_mode<synchronous>, transform_indices = @transform_7, window_bounds = array<i64: 1, 8>}, {pipeline_mode = #tpu.pipeline_mode<synchronous>, transform_indices = @transform_8, window_bounds = array<i64: 1, 8>}, {pipeline_mode = #tpu.pipeline_mode<synchronous>, transform_indices = @transform_9, window_bounds = array<i64: 1, 32>}, {transform_indices = @transform_10, window_bounds = array<i64: 16, 8>}, {transform_indices = @transform_11, window_bounds = array<i64: 16, 8>}, {transform_indices = @transform_12, window_bounds = array<i64: 16, 8>}, {transform_indices = @transform_13, window_bounds = array<i64: 16, 8>}, {transform_indices = @transform_14, window_bounds = array<i64: 16, 32>}]} {
    %c0 = arith.constant 0 : index
    %c0_0 = arith.constant 0 : index
    %0 = vector.load %arg1[%c0, %c0_0] : memref<16x8xf32, #tpu.memory_space<vmem>>, vector<16x8xf32>
    %c0_1 = arith.constant 0 : index
    %c0_2 = arith.constant 0 : index
    %1 = vector.load %arg6[%c0_1, %c0_2] : memref<1x8xf32, #tpu.memory_space<vmem>>, vector<1x8xf32>
    %2 = vector.broadcast %1 : vector<1x8xf32> to vector<16x8xf32>
    %3 = arith.mulf %0, %2 : vector<16x8xf32>
    %c0_3 = arith.constant 0 : index
    %c0_4 = arith.constant 0 : index
    %4 = vector.load %arg11[%c0_3, %c0_4] : memref<16x8xf32, #tpu.memory_space<vmem>>, vector<16x8xf32>
    tpu.vector_store %arg11[%c0_3, %c0_4], %3 {strides = array<i32>} : memref<16x8xf32, #tpu.memory_space<vmem>>, vector<16x8xf32>,
    %c0_5 = arith.constant 0 : index
    %c0_6 = arith.constant 0 : index
    %5 = vector.load %arg2[%c0_5, %c0_6] : memref<16x8xf32, #tpu.memory_space<vmem>>, vector<16x8xf32>
    %c0_7 = arith.constant 0 : index
    %c0_8 = arith.constant 0 : index
    %6 = vector.load %arg7[%c0_7, %c0_8] : memref<1x8xf32, #tpu.memory_space<vmem>>, vector<1x8xf32>
    %7 = vector.broadcast %6 : vector<1x8xf32> to vector<16x8xf32>
    %8 = arith.mulf %5, %7 : vector<16x8xf32>
    %c0_9 = arith.constant 0 : index
    %c0_10 = arith.constant 0 : index
    %9 = vector.load %arg12[%c0_9, %c0_10] : memref<16x8xf32, #tpu.memory_space<vmem>>, vector<16x8xf32>
    tpu.vector_store %arg12[%c0_9, %c0_10], %8 {strides = array<i32>} : memref<16x8xf32, #tpu.memory_space<vmem>>, vector<16x8xf32>,
    %c0_11 = arith.constant 0 : index
    %c0_12 = arith.constant 0 : index
    %10 = vector.load %arg3[%c0_11, %c0_12] : memref<16x8xf32, #tpu.memory_space<vmem>>, vector<16x8xf32>
    %c0_13 = arith.constant 0 : index
    %c0_14 = arith.constant 0 : index
    %11 = vector.load %arg8[%c0_13, %c0_14] : memref<1x8xf32, #tpu.memory_space<vmem>>, vector<1x8xf32>
    %12 = vector.broadcast %11 : vector<1x8xf32> to vector<16x8xf32>
    %13 = arith.mulf %10, %12 : vector<16x8xf32>
    %c0_15 = arith.constant 0 : index
    %c0_16 = arith.constant 0 : index
    %14 = vector.load %arg13[%c0_15, %c0_16] : memref<16x8xf32, #tpu.memory_space<vmem>>, vector<16x8xf32>
    tpu.vector_store %arg13[%c0_15, %c0_16], %13 {strides = array<i32>} : memref<16x8xf32, #tpu.memory_space<vmem>>, vector<16x8xf32>,
    %c0_17 = arith.constant 0 : index
    %c0_18 = arith.constant 0 : index
    %15 = vector.load %arg4[%c0_17, %c0_18] : memref<16x8xf32, #tpu.memory_space<vmem>>, vector<16x8xf32>
    %c0_19 = arith.constant 0 : index
    %c0_20 = arith.constant 0 : index
    %16 = vector.load %arg9[%c0_19, %c0_20] : memref<1x8xf32, #tpu.memory_space<vmem>>, vector<1x8xf32>
    %17 = vector.broadcast %16 : vector<1x8xf32> to vector<16x8xf32>
    %18 = arith.mulf %15, %17 : vector<16x8xf32>
    %c0_21 = arith.constant 0 : index
    %c0_22 = arith.constant 0 : index
    %19 = vector.load %arg14[%c0_21, %c0_22] : memref<16x8xf32, #tpu.memory_space<vmem>>, vector<16x8xf32>
    tpu.vector_store %arg14[%c0_21, %c0_22], %18 {strides = array<i32>} : memref<16x8xf32, #tpu.memory_space<vmem>>, vector<16x8xf32>,
    %c0_23 = arith.constant 0 : index
    %c0_24 = arith.constant 0 : index
    %20 = vector.load %arg5[%c0_23, %c0_24] : memref<16x32xf32, #tpu.memory_space<vmem>>, vector<16x32xf32>
    %c0_25 = arith.constant 0 : index
    %c0_26 = arith.constant 0 : index
    %21 = vector.load %arg10[%c0_25, %c0_26] : memref<1x32xf32, #tpu.memory_space<vmem>>, vector<1x32xf32>
    %22 = vector.broadcast %21 : vector<1x32xf32> to vector<16x32xf32>
    %23 = arith.mulf %20, %22 : vector<16x32xf32>
    %c0_27 = arith.constant 0 : index
    %c0_28 = arith.constant 0 : index
    %24 = vector.load %arg15[%c0_27, %c0_28] : memref<16x32xf32, #tpu.memory_space<vmem>>, vector<16x32xf32>
    tpu.vector_store %arg15[%c0_27, %c0_28], %23 {strides = array<i32>} : memref<16x32xf32, #tpu.memory_space<vmem>>, vector<16x32xf32>,
    return
  }
  func.func @transform_0(%arg0: i32) -> (i32, i32) {
    %c0_i32 = arith.constant 0 : i32
    %c0_i32_0 = arith.constant 0 : i32
    return %arg0, %c0_i32 : i32, i32
  }
  func.func @transform_1(%arg0: i32) -> (i32, i32) {
    %c0_i32 = arith.constant 0 : i32
    %c0_i32_0 = arith.constant 0 : i32
    return %arg0, %c0_i32 : i32, i32
  }
  func.func @transform_2(%arg0: i32) -> (i32, i32) {
    %c0_i32 = arith.constant 0 : i32
    %c0_i32_0 = arith.constant 0 : i32
    return %arg0, %c0_i32 : i32, i32
  }
  func.func @transform_3(%arg0: i32) -> (i32, i32) {
    %c0_i32 = arith.constant 0 : i32
    %c0_i32_0 = arith.constant 0 : i32
    return %arg0, %c0_i32 : i32, i32
  }
  func.func @transform_4(%arg0: i32) -> (i32, i32) {
    %c0_i32 = arith.constant 0 : i32
    %c0_i32_0 = arith.constant 0 : i32
    return %arg0, %c0_i32 : i32, i32
  }
  func.func @transform_5(%arg0: i32) -> (i32, i32) {
    %c0_i32 = arith.constant 0 : i32
    %c0_i32_0 = arith.constant 0 : i32
    %c0_i32_1 = arith.constant 0 : i32
    return %c0_i32, %c0_i32_0 : i32, i32
  }
  func.func @transform_6(%arg0: i32) -> (i32, i32) {
    %c0_i32 = arith.constant 0 : i32
    %c0_i32_0 = arith.constant 0 : i32
    %c0_i32_1 = arith.constant 0 : i32
    return %c0_i32, %c0_i32_0 : i32, i32
  }
  func.func @transform_7(%arg0: i32) -> (i32, i32) {
    %c0_i32 = arith.constant 0 : i32
    %c0_i32_0 = arith.constant 0 : i32
    %c0_i32_1 = arith.constant 0 : i32
    return %c0_i32, %c0_i32_0 : i32, i32
  }
  func.func @transform_8(%arg0: i32) -> (i32, i32) {
    %c0_i32 = arith.constant 0 : i32
    %c0_i32_0 = arith.constant 0 : i32
    %c0_i32_1 = arith.constant 0 : i32
    return %c0_i32, %c0_i32_0 : i32, i32
  }
  func.func @transform_9(%arg0: i32) -> (i32, i32) {
    %c0_i32 = arith.constant 0 : i32
    %c0_i32_0 = arith.constant 0 : i32
    %c0_i32_1 = arith.constant 0 : i32
    return %c0_i32, %c0_i32_0 : i32, i32
  }
  func.func @transform_10(%arg0: i32) -> (i32, i32) {
    %c0_i32 = arith.constant 0 : i32
    %c0_i32_0 = arith.constant 0 : i32
    return %arg0, %c0_i32 : i32, i32
  }
  func.func @transform_11(%arg0: i32) -> (i32, i32) {
    %c0_i32 = arith.constant 0 : i32
    %c0_i32_0 = arith.constant 0 : i32
    return %arg0, %c0_i32 : i32, i32
  }
  func.func @transform_12(%arg0: i32) -> (i32, i32) {
    %c0_i32 = arith.constant 0 : i32
    %c0_i32_0 = arith.constant 0 : i32
    return %arg0, %c0_i32 : i32, i32
  }
  func.func @transform_13(%arg0: i32) -> (i32, i32) {
    %c0_i32 = arith.constant 0 : i32
    %c0_i32_0 = arith.constant 0 : i32
    return %arg0, %c0_i32 : i32, i32
  }
  func.func @transform_14(%arg0: i32) -> (i32, i32) {
    %c0_i32 = arith.constant 0 : i32
    %c0_i32_0 = arith.constant 0 : i32
    return %arg0, %c0_i32 : i32, i32
  }
}

</mosaic_0001>

<llo_original>
// kernel: tile.8
$region0: #{tile.8}
  #allocation0 [shape = 's32[1]{0}', space=sflag, size = 0x4, scoped, tag = 'scoped memory for tile.8']
  %s0 = inlined_call_operand.vmem [shape: f32[16], index: 0, kind: input, shape index: {}]
  %s1 = inlined_call_operand.vmem [shape: f32[2,16], index: 1, kind: output, shape index: {}]
  // Predicated region
  $region2: #{tile.8} parent=0 // pred_check
    _
  $region3: #{tile.8} parent=0 // pred_check_branch
    %3 = sbr.rel (0) target = $region5
  $region4: #{tile.8} parent=0 // pred_region
    _
  $region5: #{tile.8} parent=0 // pred_fallthru
    _
  %v4 = vld [vmem:[%s0] ss:$0 sm:$0xff]
  %5 = vst [vmem:[%s1] sm:$0x3] %v4

// kernel: tile.9
$region0: #{tile.9}
  %s0 = inlined_call_operand.vmem [shape: f32[2,16], index: 0, kind: input, shape index: {}]
  %s1 = inlined_call_operand.vmem [shape: f32[1,32], index: 1, kind: output, shape index: {}]
  $region1: #{tile.9} parent=0
    #allocation0 [shape = 'u8[4096]{0}', space=vmem, size = 0x1000, scoped, tag = 'scoped mem for output reshape']
    #allocation1 [shape = 'u8[4096]{0}', space=vmem, size = 0x1000, scoped, tag = 'scoped mem for input reshape']
    %s3 = sshllo.u32 0, 2
    %v4 = vld [vmem:[%s0] sm:%s3]
    %5 = vst [vmem:[#allocation1] sm:%s3] %v4
    %v6 = vld [vmem:[#allocation1] sm:$0x1]
    %vm7 = vcmask 130048
    %8 = vst.msk [vmem:[#allocation0] sm:$0x1] %vm7, %v6
    %s9 = scalar_lea.vmem [#allocation1], 1
    %v10 = vld [vmem:[%s9] sm:$0x1]
    %11 = vrot.lane.b32.xlu0 %v10, 16
    %v12 = vpop.permute.xlu0 %11
    %vm13 = vcmask 261248
    %14 = vst.msk [vmem:[#allocation0] sm:$0x1] %vm13, %v12
    %s16 = sshllo.u32 0, 1
    %v18 = vld [vmem:[#allocation0] sm:%s16]
    %s19 = sshllo.u32 0, 1
    %20 = vst [vmem:[%s1] sm:%s19] %v18

// kernel: layer_scale_d8.1
$region0: #{layer_scale_d8.1}
  #allocation0 [shape = 'u32[]', space=smem, size = 0x4, offset = 0x4, fixed_abs, tag = 'smem constant byte address 0x4 - core index']
  #allocation1 [shape = 'u32[144,128]{1,0:T(1,128)}', space=vmem, size = 0x12000, scoped, tag = 'internal scratch']
  %s0 = inlined_call_operand.vmem [shape: f32[32,8], index: 0, kind: input, shape index: {}]
  %s1 = inlined_call_operand.vmem [shape: f32[32,8], index: 1, kind: input, shape index: {}]
  %s2 = inlined_call_operand.vmem [shape: f32[32,8], index: 2, kind: input, shape index: {}]
  %s3 = inlined_call_operand.vmem [shape: f32[32,8], index: 3, kind: input, shape index: {}]
  %s4 = inlined_call_operand.vmem [shape: f32[32,32], index: 4, kind: input, shape index: {}]
  %s5 = inlined_call_operand.vmem [shape: f32[1,8], index: 5, kind: input, shape index: {}]
  %s6 = inlined_call_operand.vmem [shape: f32[1,8], index: 6, kind: input, shape index: {}]
  %s7 = inlined_call_operand.vmem [shape: f32[1,8], index: 7, kind: input, shape index: {}]
  %s8 = inlined_call_operand.vmem [shape: f32[1,8], index: 8, kind: input, shape index: {}]
  %s9 = inlined_call_operand.vmem [shape: f32[1,32], index: 9, kind: input, shape index: {}]
  %s10 = inlined_call_operand.vmem [shape: f32[32,8], index: 10, kind: output, shape index: {0}]
  %s11 = inlined_call_operand.vmem [shape: f32[32,8], index: 11, kind: output, shape index: {1}]
  %s12 = inlined_call_operand.vmem [shape: f32[32,8], index: 12, kind: output, shape index: {2}]
  %s13 = inlined_call_operand.vmem [shape: f32[32,8], index: 13, kind: output, shape index: {3}]
  %s14 = inlined_call_operand.vmem [shape: f32[32,32], index: 14, kind: output, shape index: {4}]
  %15 = xla_tuple %s10, %s11, %s12, %s13, %s14
  %s16 = sld [smem:[#allocation0]]
  $region105: #{layer_scale_d8.1} parent=0
    _
  %s18 = ssub.s32 1, %s16
  %s19 = scalar_select 0, %s18, %s16
  loop: start=0, step=1, limit=4
  $region2: #{layer_scale_d8.1} parent=0 // loop_pre_header
    _
  $region3: #{layer_scale_d8.1} parent=0 // loop_header
    %s21 = sphi 0, %s25
    %p22 = scmp.ge.s32.totalorder %s21, 4
    %s31 = sphi 0, %s33
    %s34 = sphi 0, %s31
    %s35 = sphi 0, %s34
    %s51 = sphi 0, %s35
    %s57 = sphi 0, %s59
    %s60 = sphi 0, %s57
    %s61 = sphi 0, %s60
    %s77 = sphi 0, %s61
    %s83 = sphi 0, %s85
    %s86 = sphi 0, %s83
    %s87 = sphi 0, %s86
    %s103 = sphi 0, %s87
    %s109 = sphi 0, %s111
    %s112 = sphi 0, %s109
    %s113 = sphi 0, %s112
    %s129 = sphi 0, %s113
    %s135 = sphi 0, %s137
    %s138 = sphi 0, %s135
    %s139 = sphi 0, %s138
    %s155 = sphi 0, %s139
    %s159 = sphi 0, %s159
    %s161 = sphi 0, %s159
    %s162 = sphi 0, %s161
    %s176 = sphi 0, %s162
    %s180 = sphi 0, %s180
    %s182 = sphi 0, %s180
    %s183 = sphi 0, %s182
    %s197 = sphi 0, %s183
    %s201 = sphi 0, %s201
    %s203 = sphi 0, %s201
    %s204 = sphi 0, %s203
    %s218 = sphi 0, %s204
    %s222 = sphi 0, %s222
    %s224 = sphi 0, %s222
    %s225 = sphi 0, %s224
    %s239 = sphi 0, %s225
    %s243 = sphi 0, %s243
    %s245 = sphi 0, %s243
    %s246 = sphi 0, %s245
    %s260 = sphi 0, %s246
    %s266 = sphi 0, %s268
    %s269 = sphi 0, %s266
    %s270 = sphi 0, %s269
    %s286 = sphi 0, %s270
    %s292 = sphi 0, %s294
    %s295 = sphi 0, %s292
    %s296 = sphi 0, %s295
    %s312 = sphi 0, %s296
    %s318 = sphi 0, %s320
    %s321 = sphi 0, %s318
    %s322 = sphi 0, %s321
    %s338 = sphi 0, %s322
    %s344 = sphi 0, %s346
    %s347 = sphi 0, %s344
    %s348 = sphi 0, %s347
    %s364 = sphi 0, %s348
    %s370 = sphi 0, %s372
    %s373 = sphi 0, %s370
    %s374 = sphi 0, %s373
    %s390 = sphi 0, %s374
  $region4: #{layer_scale_d8.1} parent=0 // loop_header_branch
    %24 = sbr.rel (%p22) target = $region8
  $region5: #{layer_scale_d8.1} parent=0 // loop_body
    %s26 = ssub.s32 %s21, 1
    %s27 = ssub.s32 %s21, 2
    %s28 = sadd.s32 %s21, 1
    %s29 = ssub.s32 %s21, %s28
    %p30 = scmp.eq.s32.totalorder %s29, 0
    %s32 = sadd.s32 %s31, 1
    %s33 = scalar_select %p30, %s31, %s32
    %p36 = pneg %p30
    %p37 = scmp.eq.s32.totalorder %s21, 1
    %p38 = por %p36, %p37
    %p39 = scmp.ne.s32.totalorder %s31, %s34
    %p40 = scmp.eq.s32.totalorder %s21, 0
    %p41 = por %p39, %p40
    %p42 = scmp.ne.s32.totalorder %s31, %s34
    %p43 = scmp.eq.s32.totalorder %s26, 1
    %p44 = por %p42, %p43
    %p45 = scmp.ne.s32.totalorder %s34, %s35
    %p46 = scmp.eq.s32.totalorder %s26, 0
    %p47 = por %p45, %p46
    %p48 = scmp.ne.s32.totalorder %s34, %s35
    %p49 = scmp.eq.s32.totalorder %s27, 1
    %p50 = por %p48, %p49
    %p52 = scmp.ne.s32.totalorder %s35, %s51
    %p53 = scmp.eq.s32.totalorder %s27, 0
    %p54 = por %p52, %p53
    %s55 = ssub.s32 %s21, %s28
    %p56 = scmp.eq.s32.totalorder %s55, 0
    %s58 = sadd.s32 %s57, 1
    %s59 = scalar_select %p56, %s57, %s58
    %p62 = pneg %p56
    %p63 = scmp.eq.s32.totalorder %s21, 1
    %p64 = por %p62, %p63
    %p65 = scmp.ne.s32.totalorder %s57, %s60
    %p66 = scmp.eq.s32.totalorder %s21, 0
    %p67 = por %p65, %p66
    %p68 = scmp.ne.s32.totalorder %s57, %s60
    %p69 = scmp.eq.s32.totalorder %s26, 1
    %p70 = por %p68, %p69
    %p71 = scmp.ne.s32.totalorder %s60, %s61
    %p72 = scmp.eq.s32.totalorder %s26, 0
    %p73 = por %p71, %p72
    %p74 = scmp.ne.s32.totalorder %s60, %s61
    %p75 = scmp.eq.s32.totalorder %s27, 1
    %p76 = por %p74, %p75
    %p78 = scmp.ne.s32.totalorder %s61, %s77
    %p79 = scmp.eq.s32.totalorder %s27, 0
    %p80 = por %p78, %p79
    %s81 = ssub.s32 %s21, %s28
    %p82 = scmp.eq.s32.totalorder %s81, 0
    %s84 = sadd.s32 %s83, 1
    %s85 = scalar_select %p82, %s83, %s84
    %p88 = pneg %p82
    %p89 = scmp.eq.s32.totalorder %s21, 1
    %p90 = por %p88, %p89
    %p91 = scmp.ne.s32.totalorder %s83, %s86
    %p92 = scmp.eq.s32.totalorder %s21, 0
    %p93 = por %p91, %p92
    %p94 = scmp.ne.s32.totalorder %s83, %s86
    %p95 = scmp.eq.s32.totalorder %s26, 1
    %p96 = por %p94, %p95
    %p97 = scmp.ne.s32.totalorder %s86, %s87
    %p98 = scmp.eq.s32.totalorder %s26, 0
    %p99 = por %p97, %p98
    %p100 = scmp.ne.s32.totalorder %s86, %s87
    %p101 = scmp.eq.s32.totalorder %s27, 1
    %p102 = por %p100, %p101
    %p104 = scmp.ne.s32.totalorder %s87, %s103
    %p105 = scmp.eq.s32.totalorder %s27, 0
    %p106 = por %p104, %p105
    %s107 = ssub.s32 %s21, %s28
    %p108 = scmp.eq.s32.totalorder %s107, 0
    %s110 = sadd.s32 %s109, 1
    %s111 = scalar_select %p108, %s109, %s110
    %p114 = pneg %p108
    %p115 = scmp.eq.s32.totalorder %s21, 1
    %p116 = por %p114, %p115
    %p117 = scmp.ne.s32.totalorder %s109, %s112
    %p118 = scmp.eq.s32.totalorder %s21, 0
    %p119 = por %p117, %p118
    %p120 = scmp.ne.s32.totalorder %s109, %s112
    %p121 = scmp.eq.s32.totalorder %s26, 1
    %p122 = por %p120, %p121
    %p123 = scmp.ne.s32.totalorder %s112, %s113
    %p124 = scmp.eq.s32.totalorder %s26, 0
    %p125 = por %p123, %p124
    %p126 = scmp.ne.s32.totalorder %s112, %s113
    %p127 = scmp.eq.s32.totalorder %s27, 1
    %p128 = por %p126, %p127
    %p130 = scmp.ne.s32.totalorder %s113, %s129
    %p131 = scmp.eq.s32.totalorder %s27, 0
    %p132 = por %p130, %p131
    %s133 = ssub.s32 %s21, %s28
    %p134 = scmp.eq.s32.totalorder %s133, 0
    %s136 = sadd.s32 %s135, 1
    %s137 = scalar_select %p134, %s135, %s136
    %p140 = pneg %p134
    %p141 = scmp.eq.s32.totalorder %s21, 1
    %p142 = por %p140, %p141
    %p143 = scmp.ne.s32.totalorder %s135, %s138
    %p144 = scmp.eq.s32.totalorder %s21, 0
    %p145 = por %p143, %p144
    %p146 = scmp.ne.s32.totalorder %s135, %s138
    %p147 = scmp.eq.s32.totalorder %s26, 1
    %p148 = por %p146, %p147
    %p149 = scmp.ne.s32.totalorder %s138, %s139
    %p150 = scmp.eq.s32.totalorder %s26, 0
    %p151 = por %p149, %p150
    %p152 = scmp.ne.s32.totalorder %s138, %s139
    %p153 = scmp.eq.s32.totalorder %s27, 1
    %p154 = por %p152, %p153
    %p156 = scmp.ne.s32.totalorder %s139, %s155
    %p157 = scmp.eq.s32.totalorder %s27, 0
    %p158 = por %p156, %p157
    %s160 = sadd.s32 %s159, 1
    %p163 = scmp.eq.s32.totalorder %s21, 1
    %p164 = scmp.ne.s32.totalorder %s159, %s161
    %p165 = scmp.eq.s32.totalorder %s21, 0
    %p166 = por %p164, %p165
    %p167 = scmp.ne.s32.totalorder %s159, %s161
    %p168 = scmp.eq.s32.totalorder %s26, 1
    %p169 = por %p167, %p168
    %p170 = scmp.ne.s32.totalorder %s161, %s162
    %p171 = scmp.eq.s32.totalorder %s26, 0
    %p172 = por %p170, %p171
    %p173 = scmp.ne.s32.totalorder %s161, %s162
    %p174 = scmp.eq.s32.totalorder %s27, 1
    %p175 = por %p173, %p174
    %p177 = scmp.ne.s32.totalorder %s162, %s176
    %p178 = scmp.eq.s32.totalorder %s27, 0
    %p179 = por %p177, %p178
    %s181 = sadd.s32 %s180, 1
    %p184 = scmp.eq.s32.totalorder %s21, 1
    %p185 = scmp.ne.s32.totalorder %s180, %s182
    %p186 = scmp.eq.s32.totalorder %s21, 0
    %p187 = por %p185, %p186
    %p188 = scmp.ne.s32.totalorder %s180, %s182
    %p189 = scmp.eq.s32.totalorder %s26, 1
    %p190 = por %p188, %p189
    %p191 = scmp.ne.s32.totalorder %s182, %s183
    %p192 = scmp.eq.s32.totalorder %s26, 0
    %p193 = por %p191, %p192
    %p194 = scmp.ne.s32.totalorder %s182, %s183
    %p195 = scmp.eq.s32.totalorder %s27, 1
    %p196 = por %p194, %p195
    %p198 = scmp.ne.s32.totalorder %s183, %s197
    %p199 = scmp.eq.s32.totalorder %s27, 0
    %p200 = por %p198, %p199
    %s202 = sadd.s32 %s201, 1
    %p205 = scmp.eq.s32.totalorder %s21, 1
    %p206 = scmp.ne.s32.totalorder %s201, %s203
    %p207 = scmp.eq.s32.totalorder %s21, 0
    %p208 = por %p206, %p207
    %p209 = scmp.ne.s32.totalorder %s201, %s203
    %p210 = scmp.eq.s32.totalorder %s26, 1
    %p211 = por %p209, %p210
    %p212 = scmp.ne.s32.totalorder %s203, %s204
    %p213 = scmp.eq.s32.totalorder %s26, 0
    %p214 = por %p212, %p213
    %p215 = scmp.ne.s32.totalorder %s203, %s204
    %p216 = scmp.eq.s32.totalorder %s27, 1
    %p217 = por %p215, %p216
    %p219 = scmp.ne.s32.totalorder %s204, %s218
    %p220 = scmp.eq.s32.totalorder %s27, 0
    %p221 = por %p219, %p220
    %s223 = sadd.s32 %s222, 1
    %p226 = scmp.eq.s32.totalorder %s21, 1
    %p227 = scmp.ne.s32.totalorder %s222, %s224
    %p228 = scmp.eq.s32.totalorder %s21, 0
    %p229 = por %p227, %p228
    %p230 = scmp.ne.s32.totalorder %s222, %s224
    %p231 = scmp.eq.s32.totalorder %s26, 1
    %p232 = por %p230, %p231
    %p233 = scmp.ne.s32.totalorder %s224, %s225
    %p234 = scmp.eq.s32.totalorder %s26, 0
    %p235 = por %p233, %p234
    %p236 = scmp.ne.s32.totalorder %s224, %s225
    %p237 = scmp.eq.s32.totalorder %s27, 1
    %p238 = por %p236, %p237
    %p240 = scmp.ne.s32.totalorder %s225, %s239
    %p241 = scmp.eq.s32.totalorder %s27, 0
    %p242 = por %p240, %p241
    %s244 = sadd.s32 %s243, 1
    %p247 = scmp.eq.s32.totalorder %s21, 1
    %p248 = scmp.ne.s32.totalorder %s243, %s245
    %p249 = scmp.eq.s32.totalorder %s21, 0
    %p250 = por %p248, %p249
    %p251 = scmp.ne.s32.totalorder %s243, %s245
    %p252 = scmp.eq.s32.totalorder %s26, 1
    %p253 = por %p251, %p252
    %p254 = scmp.ne.s32.totalorder %s245, %s246
    %p255 = scmp.eq.s32.totalorder %s26, 0
    %p256 = por %p254, %p255
    %p257 = scmp.ne.s32.totalorder %s245, %s246
    %p258 = scmp.eq.s32.totalorder %s27, 1
    %p259 = por %p257, %p258
    %p261 = scmp.ne.s32.totalorder %s246, %s260
    %p262 = scmp.eq.s32.totalorder %s27, 0
    %p263 = por %p261, %p262
    %s264 = ssub.s32 %s21, %s28
    %p265 = scmp.eq.s32.totalorder %s264, 0
    %s267 = sadd.s32 %s266, 1
    %s268 = scalar_select %p265, %s266, %s267
    %p271 = pneg %p265
    %p272 = scmp.eq.s32.totalorder %s21, 1
    %p273 = por %p271, %p272
    %p274 = scmp.ne.s32.totalorder %s266, %s269
    %p275 = scmp.eq.s32.totalorder %s21, 0
    %p276 = por %p274, %p275
    %p277 = scmp.ne.s32.totalorder %s266, %s269
    %p278 = scmp.eq.s32.totalorder %s26, 1
    %p279 = por %p277, %p278
    %p280 = scmp.ne.s32.totalorder %s269, %s270
    %p281 = scmp.eq.s32.totalorder %s26, 0
    %p282 = por %p280, %p281
    %p283 = scmp.ne.s32.totalorder %s269, %s270
    %p284 = scmp.eq.s32.totalorder %s27, 1
    %p285 = por %p283, %p284
    %p287 = scmp.ne.s32.totalorder %s270, %s286
    %p288 = scmp.eq.s32.totalorder %s27, 0
    %p289 = por %p287, %p288
    %s290 = ssub.s32 %s21, %s28
    %p291 = scmp.eq.s32.totalorder %s290, 0
    %s293 = sadd.s32 %s292, 1
    %s294 = scalar_select %p291, %s292, %s293
    %p297 = pneg %p291
    %p298 = scmp.eq.s32.totalorder %s21, 1
    %p299 = por %p297, %p298
    %p300 = scmp.ne.s32.totalorder %s292, %s295
    %p301 = scmp.eq.s32.totalorder %s21, 0
    %p302 = por %p300, %p301
    %p303 = scmp.ne.s32.totalorder %s292, %s295
    %p304 = scmp.eq.s32.totalorder %s26, 1
    %p305 = por %p303, %p304
    %p306 = scmp.ne.s32.totalorder %s295, %s296
    %p307 = scmp.eq.s32.totalorder %s26, 0
    %p308 = por %p306, %p307
    %p309 = scmp.ne.s32.totalorder %s295, %s296
    %p310 = scmp.eq.s32.totalorder %s27, 1
    %p311 = por %p309, %p310
    %p313 = scmp.ne.s32.totalorder %s296, %s312
    %p314 = scmp.eq.s32.totalorder %s27, 0
    %p315 = por %p313, %p314
    %s316 = ssub.s32 %s21, %s28
    %p317 = scmp.eq.s32.totalorder %s316, 0
    %s319 = sadd.s32 %s318, 1
    %s320 = scalar_select %p317, %s318, %s319
    %p323 = pneg %p317
    %p324 = scmp.eq.s32.totalorder %s21, 1
    %p325 = por %p323, %p324
    %p326 = scmp.ne.s32.totalorder %s318, %s321
    %p327 = scmp.eq.s32.totalorder %s21, 0
    %p328 = por %p326, %p327
    %p329 = scmp.ne.s32.totalorder %s318, %s321
    %p330 = scmp.eq.s32.totalorder %s26, 1
    %p331 = por %p329, %p330
    %p332 = scmp.ne.s32.totalorder %s321, %s322
    %p333 = scmp.eq.s32.totalorder %s26, 0
    %p334 = por %p332, %p333
    %p335 = scmp.ne.s32.totalorder %s321, %s322
    %p336 = scmp.eq.s32.totalorder %s27, 1
    %p337 = por %p335, %p336
    %p339 = scmp.ne.s32.totalorder %s322, %s338
    %p340 = scmp.eq.s32.totalorder %s27, 0
    %p341 = por %p339, %p340
    %s342 = ssub.s32 %s21, %s28
    %p343 = scmp.eq.s32.totalorder %s342, 0
    %s345 = sadd.s32 %s344, 1
    %s346 = scalar_select %p343, %s344, %s345
    %p349 = pneg %p343
    %p350 = scmp.eq.s32.totalorder %s21, 1
    %p351 = por %p349, %p350
    %p352 = scmp.ne.s32.totalorder %s344, %s347
    %p353 = scmp.eq.s32.totalorder %s21, 0
    %p354 = por %p352, %p353
    %p355 = scmp.ne.s32.totalorder %s344, %s347
    %p356 = scmp.eq.s32.totalorder %s26, 1
    %p357 = por %p355, %p356
    %p358 = scmp.ne.s32.totalorder %s347, %s348
    %p359 = scmp.eq.s32.totalorder %s26, 0
    %p360 = por %p358, %p359
    %p361 = scmp.ne.s32.totalorder %s347, %s348
    %p362 = scmp.eq.s32.totalorder %s27, 1
    %p363 = por %p361, %p362
    %p365 = scmp.ne.s32.totalorder %s348, %s364
    %p366 = scmp.eq.s32.totalorder %s27, 0
    %p367 = por %p365, %p366
    %s368 = ssub.s32 %s21, %s28
    %p369 = scmp.eq.s32.totalorder %s368, 0
    %s371 = sadd.s32 %s370, 1
    %s372 = scalar_select %p369, %s370, %s371
    %p375 = pneg %p369
    %p376 = scmp.eq.s32.totalorder %s21, 1
    %p377 = por %p375, %p376
    %p378 = scmp.ne.s32.totalorder %s370, %s373
    %p379 = scmp.eq.s32.totalorder %s21, 0
    %p380 = por %p378, %p379
    %p381 = scmp.ne.s32.totalorder %s370, %s373
    %p382 = scmp.eq.s32.totalorder %s26, 1
    %p383 = por %p381, %p382
    %p384 = scmp.ne.s32.totalorder %s373, %s374
    %p385 = scmp.eq.s32.totalorder %s26, 0
    %p386 = por %p384, %p385
    %p387 = scmp.ne.s32.totalorder %s373, %s374
    %p388 = scmp.eq.s32.totalorder %s27, 1
    %p389 = por %p387, %p388
    %p391 = scmp.ne.s32.totalorder %s374, %s390
    %p392 = scmp.eq.s32.totalorder %s27, 0
    %p393 = por %p391, %p392
    %p394 = scmp.le.s32.totalorder 1, %s21
    %p395 = scmp.lt.s32.totalorder %s21, 3
    %p396 = pnand %p394, %p395
    %p397 = pneg %p396
    // Predicated region
    $region9: #{layer_scale_d8.1} parent=5 // pred_check
      _
    $region10: #{layer_scale_d8.1} parent=5 // pred_check_branch
      %399 = sbr.rel (%p396) target = $region12
    $region11: #{layer_scale_d8.1} parent=5 // pred_region
      %s400 = ssub.s32 %s21, 1
      // Predicated region
      $region13: #{layer_scale_d8.1} parent=11 // pred_check
        %p401 = pneg %p172
      $region14: #{layer_scale_d8.1} parent=11 // pred_check_branch
        %403 = sbr.rel (%p401) target = $region16
      $region15: #{layer_scale_d8.1} parent=11 // pred_region
        _
      $region16: #{layer_scale_d8.1} parent=11 // pred_fallthru
        _
      // Predicated region
      $region17: #{layer_scale_d8.1} parent=11 // pred_check
        %p404 = pneg %p193
      $region18: #{layer_scale_d8.1} parent=11 // pred_check_branch
        %406 = sbr.rel (%p404) target = $region20
      $region19: #{layer_scale_d8.1} parent=11 // pred_region
        _
      $region20: #{layer_scale_d8.1} parent=11 // pred_fallthru
        _
      // Predicated region
      $region21: #{layer_scale_d8.1} parent=11 // pred_check
        %p407 = pneg %p214
      $region22: #{layer_scale_d8.1} parent=11 // pred_check_branch
        %409 = sbr.rel (%p407) target = $region24
      $region23: #{layer_scale_d8.1} parent=11 // pred_region
        _
      $region24: #{layer_scale_d8.1} parent=11 // pred_fallthru
        _
      // Predicated region
      $region25: #{layer_scale_d8.1} parent=11 // pred_check
        %p410 = pneg %p235
      $region26: #{layer_scale_d8.1} parent=11 // pred_check_branch
        %412 = sbr.rel (%p410) target = $region28
      $region27: #{layer_scale_d8.1} parent=11 // pred_region
        _
      $region28: #{layer_scale_d8.1} parent=11 // pred_fallthru
        _
      // Predicated region
      $region29: #{layer_scale_d8.1} parent=11 // pred_check
        %p413 = pneg %p256
      $region30: #{layer_scale_d8.1} parent=11 // pred_check_branch
        %415 = sbr.rel (%p413) target = $region32
      $region31: #{layer_scale_d8.1} parent=11 // pred_region
        _
      $region32: #{layer_scale_d8.1} parent=11 // pred_fallthru
        _
    $region12: #{layer_scale_d8.1} parent=5 // pred_fallthru
      _
    %p416 = scmp.lt.s32.totalorder %s21, 2
    // Predicated region
    $region33: #{layer_scale_d8.1} parent=5 // pred_check
      %p417 = pneg %p416
    $region34: #{layer_scale_d8.1} parent=5 // pred_check_branch
      %419 = sbr.rel (%p417) target = $region36
    $region35: #{layer_scale_d8.1} parent=5 // pred_region
      // Predicated region
      $region37: #{layer_scale_d8.1} parent=35 // pred_check
        %p420 = pneg %p41
      $region38: #{layer_scale_d8.1} parent=35 // pred_check_branch
        %422 = sbr.rel (%p420) target = $region40
      $region39: #{layer_scale_d8.1} parent=35 // pred_region
        %s423 = smul.u32 2, %s21
        %p424 = scmp.lt.s32.totalorder %s423, 3
        %s425 = scalar_select %p424, %s423, 3
        %s426 = smul.addr %s425, 8
        %s427 = scalar_lea.vmem %s0, %s426
        %s428 = smul.u32 2, %s21
      $region40: #{layer_scale_d8.1} parent=35 // pred_fallthru
        _
      // Predicated region
      $region41: #{layer_scale_d8.1} parent=35 // pred_check
        %p429 = pneg %p67
      $region42: #{layer_scale_d8.1} parent=35 // pred_check_branch
        %431 = sbr.rel (%p429) target = $region44
      $region43: #{layer_scale_d8.1} parent=35 // pred_region
        %s432 = smul.u32 2, %s21
        %p433 = scmp.lt.s32.totalorder %s432, 3
        %s434 = scalar_select %p433, %s432, 3
        %s435 = smul.addr %s434, 8
        %s436 = scalar_lea.vmem %s1, %s435
        %s437 = smul.u32 2, %s21
      $region44: #{layer_scale_d8.1} parent=35 // pred_fallthru
        _
      // Predicated region
      $region45: #{layer_scale_d8.1} parent=35 // pred_check
        %p438 = pneg %p93
      $region46: #{layer_scale_d8.1} parent=35 // pred_check_branch
        %440 = sbr.rel (%p438) target = $region48
      $region47: #{layer_scale_d8.1} parent=35 // pred_region
        %s441 = smul.u32 2, %s21
        %p442 = scmp.lt.s32.totalorder %s441, 3
        %s443 = scalar_select %p442, %s441, 3
        %s444 = smul.addr %s443, 8
        %s445 = scalar_lea.vmem %s2, %s444
        %s446 = smul.u32 2, %s21
      $region48: #{layer_scale_d8.1} parent=35 // pred_fallthru
        _
      // Predicated region
      $region49: #{layer_scale_d8.1} parent=35 // pred_check
        %p447 = pneg %p119
      $region50: #{layer_scale_d8.1} parent=35 // pred_check_branch
        %449 = sbr.rel (%p447) target = $region52
      $region51: #{layer_scale_d8.1} parent=35 // pred_region
        %s450 = smul.u32 2, %s21
        %p451 = scmp.lt.s32.totalorder %s450, 3
        %s452 = scalar_select %p451, %s450, 3
        %s453 = smul.addr %s452, 8
        %s454 = scalar_lea.vmem %s3, %s453
        %s455 = smul.u32 2, %s21
      $region52: #{layer_scale_d8.1} parent=35 // pred_fallthru
        _
      // Predicated region
      $region53: #{layer_scale_d8.1} parent=35 // pred_check
        %p456 = pneg %p145
      $region54: #{layer_scale_d8.1} parent=35 // pred_check_branch
        %458 = sbr.rel (%p456) target = $region56
      $region55: #{layer_scale_d8.1} parent=35 // pred_region
        %s459 = smul.u32 2, %s21
        %p460 = scmp.lt.s32.totalorder %s459, 3
        %s461 = scalar_select %p460, %s459, 3
        %s462 = smul.addr %s461, 8
        %s463 = scalar_lea.vmem %s4, %s462
        %s464 = smul.u32 2, %s21
      $region56: #{layer_scale_d8.1} parent=35 // pred_fallthru
        _
    $region36: #{layer_scale_d8.1} parent=5 // pred_fallthru
      _
    %p465 = scmp.le.s32.totalorder 1, %s21
    %p466 = scmp.lt.s32.totalorder %s21, 3
    %p467 = pnand %p465, %p466
    %p468 = pneg %p467
    // Predicated region
    $region57: #{layer_scale_d8.1} parent=5 // pred_check
      _
    $region58: #{layer_scale_d8.1} parent=5 // pred_check_branch
      %470 = sbr.rel (%p467) target = $region60
    $region59: #{layer_scale_d8.1} parent=5 // pred_region
      %s471 = ssub.s32 %s21, 1
      %s472 = smul.u32 2, %s26
      %p473 = scmp.lt.s32.totalorder %s472, 3
      %s474 = scalar_select %p473, %s472, 3
      %s475 = smul.addr %s474, 8
      %s476 = scalar_lea.vmem %s0, %s475
      %p477 = pneg %p47
      %p478 = pneg %p44
      %s479 = smul.u32 2, %s26
      %p480 = scmp.lt.s32.totalorder %s479, 3
      %s481 = scalar_select %p480, %s479, 3
      %s482 = smul.addr %s481, 8
      %s483 = scalar_lea.vmem %s1, %s482
      %p484 = pneg %p73
      %p485 = pneg %p70
      %s486 = smul.u32 2, %s26
      %p487 = scmp.lt.s32.totalorder %s486, 3
      %s488 = scalar_select %p487, %s486, 3
      %s489 = smul.addr %s488, 8
      %s490 = scalar_lea.vmem %s2, %s489
      %p491 = pneg %p99
      %p492 = pneg %p96
      %s493 = smul.u32 2, %s26
      %p494 = scmp.lt.s32.totalorder %s493, 3
      %s495 = scalar_select %p494, %s493, 3
      %s496 = smul.addr %s495, 8
      %s497 = scalar_lea.vmem %s3, %s496
      %p498 = pneg %p125
      %p499 = pneg %p122
      %s500 = smul.u32 2, %s26
      %p501 = scmp.lt.s32.totalorder %s500, 3
      %s502 = scalar_select %p501, %s500, 3
      %s503 = smul.addr %s502, 8
      %s504 = scalar_lea.vmem %s4, %s503
      %p505 = pneg %p151
      %p506 = pneg %p148
      %p507 = pneg %p172
      %p508 = pneg %p169
      %p509 = pneg %p193
      %p510 = pneg %p190
      %p511 = pneg %p214
      %p512 = pneg %p211
      %p513 = pneg %p235
      %p514 = pneg %p232
      %p515 = pneg %p256
      %p516 = pneg %p253
      %p517 = pneg %p282
      %p518 = pneg %p279
      %s519 = smul.u32 2, %s26
      %p520 = scmp.lt.s32.totalorder %s519, 3
      %s521 = scalar_select %p520, %s519, 3
      %s522 = smul.addr %s521, 8
      %s523 = scalar_lea.vmem %s10, %s522
      %p524 = pneg %p308
      %p525 = pneg %p305
      %s526 = smul.u32 2, %s26
      %p527 = scmp.lt.s32.totalorder %s526, 3
      %s528 = scalar_select %p527, %s526, 3
      %s529 = smul.addr %s528, 8
      %s530 = scalar_lea.vmem %s11, %s529
      %p531 = pneg %p334
      %p532 = pneg %p331
      %s533 = smul.u32 2, %s26
      %p534 = scmp.lt.s32.totalorder %s533, 3
      %s535 = scalar_select %p534, %s533, 3
      %s536 = smul.addr %s535, 8
      %s537 = scalar_lea.vmem %s12, %s536
      %p538 = pneg %p360
      %p539 = pneg %p357
      %s540 = smul.u32 2, %s26
      %p541 = scmp.lt.s32.totalorder %s540, 3
      %s542 = scalar_select %p541, %s540, 3
      %s543 = smul.addr %s542, 8
      %s544 = scalar_lea.vmem %s13, %s543
      %p545 = pneg %p386
      %p546 = pneg %p383
      %s547 = smul.u32 2, %s26
      %p548 = scmp.lt.s32.totalorder %s547, 3
      %s549 = scalar_select %p548, %s547, 3
      %s550 = smul.addr %s549, 8
      %s551 = scalar_lea.vmem %s14, %s550
      %s552 = smul.u32 2, %s26
      %p553 = scmp.lt.s32.totalorder %s552, 3
      %s554 = scalar_select %p553, %s552, 3
      %s555 = smul.addr %s554, 8
      %s556 = scalar_lea.vmem %s0, %s555
      %s557 = smul.u32 2, %s26
      %s558 = smul.u32 2, %s26
      %p559 = scmp.lt.s32.totalorder %s558, 3
      %s560 = scalar_select %p559, %s558, 3
      %s561 = smul.addr %s560, 8
      %s562 = scalar_lea.vmem %s1, %s561
      %s563 = smul.u32 2, %s26
      %s564 = smul.u32 2, %s26
      %p565 = scmp.lt.s32.totalorder %s564, 3
      %s566 = scalar_select %p565, %s564, 3
      %s567 = smul.addr %s566, 8
      %s568 = scalar_lea.vmem %s2, %s567
      %s569 = smul.u32 2, %s26
      %s570 = smul.u32 2, %s26
      %p571 = scmp.lt.s32.totalorder %s570, 3
      %s572 = scalar_select %p571, %s570, 3
      %s573 = smul.addr %s572, 8
      %s574 = scalar_lea.vmem %s3, %s573
      %s575 = smul.u32 2, %s26
      %s576 = smul.u32 2, %s26
      %p577 = scmp.lt.s32.totalorder %s576, 3
      %s578 = scalar_select %p577, %s576, 3
      %s579 = smul.addr %s578, 8
      %s580 = scalar_lea.vmem %s4, %s579
      %s581 = smul.u32 2, %s26
      %s582 = smul.u32 2, %s26
      %p583 = scmp.lt.s32.totalorder %s582, 3
      %s584 = scalar_select %p583, %s582, 3
      %s585 = smul.addr %s584, 8
      %s586 = scalar_lea.vmem %s10, %s585
      %s587 = smul.u32 2, %s26
      %s588 = smul.u32 2, %s26
      %p589 = scmp.lt.s32.totalorder %s588, 3
      %s590 = scalar_select %p589, %s588, 3
      %s591 = smul.addr %s590, 8
      %s592 = scalar_lea.vmem %s11, %s591
      %s593 = smul.u32 2, %s26
      %s594 = smul.u32 2, %s26
      %p595 = scmp.lt.s32.totalorder %s594, 3
      %s596 = scalar_select %p595, %s594, 3
      %s597 = smul.addr %s596, 8
      %s598 = scalar_lea.vmem %s12, %s597
      %s599 = smul.u32 2, %s26
      %s600 = smul.u32 2, %s26
      %p601 = scmp.lt.s32.totalorder %s600, 3
      %s602 = scalar_select %p601, %s600, 3
      %s603 = smul.addr %s602, 8
      %s604 = scalar_lea.vmem %s13, %s603
      %s605 = smul.u32 2, %s26
      %s606 = smul.u32 2, %s26
      %p607 = scmp.lt.s32.totalorder %s606, 3
      %s608 = scalar_select %p607, %s606, 3
      %s609 = smul.addr %s608, 8
      %s610 = scalar_lea.vmem %s14, %s609
      %s611 = smul.u32 2, %s26
      %v612 = vld [vmem:[%s556] sm:$0xff]
      %v613 = vld [vmem:[%s556 + $0x8] sm:$0xff]
      %v614 = vld [vmem:[%s5] sm:$0x1]
      %v616 = vlaneseq
      %v617 = vshrl.u32 %v616, 7
      %v618 = vsub.s32 0, %v617
      %v619 = vrot.slane %v614, %v618
      %v621 = vmul.f32 %v612, %v619
      %v622 = vmul.f32 %v613, %v619
      %vm623 = vcmask 64512
      %624 = vst.msk [vmem:[%s586] sm:$0xff] %vm623, %v621
      %625 = vst.msk [vmem:[%s586 + $0x8] sm:$0xff] %vm623, %v622
      %v626 = vld [vmem:[%s562] sm:$0xff]
      %v627 = vld [vmem:[%s562 + $0x8] sm:$0xff]
      %v628 = vld [vmem:[%s6] sm:$0x1]
      %v630 = vlaneseq
      %v631 = vshrl.u32 %v630, 7
      %v632 = vsub.s32 0, %v631
      %v633 = vrot.slane %v628, %v632
      %v635 = vmul.f32 %v626, %v633
      %v636 = vmul.f32 %v627, %v633
      %637 = vst.msk [vmem:[%s592] sm:$0xff] %vm623, %v635
      %638 = vst.msk [vmem:[%s592 + $0x8] sm:$0xff] %vm623, %v636
      %v639 = vld [vmem:[%s568] sm:$0xff]
      %v640 = vld [vmem:[%s568 + $0x8] sm:$0xff]
      %v641 = vld [vmem:[%s7] sm:$0x1]
      %v643 = vlaneseq
      %v644 = vshrl.u32 %v643, 7
      %v645 = vsub.s32 0, %v644
      %v646 = vrot.slane %v641, %v645
      %v648 = vmul.f32 %v639, %v646
      %v649 = vmul.f32 %v640, %v646
      %650 = vst.msk [vmem:[%s598] sm:$0xff] %vm623, %v648
      %651 = vst.msk [vmem:[%s598 + $0x8] sm:$0xff] %vm623, %v649
      %v652 = vld [vmem:[%s574] sm:$0xff]
      %v653 = vld [vmem:[%s574 + $0x8] sm:$0xff]
      %v654 = vld [vmem:[%s8] sm:$0x1]
      %v656 = vlaneseq
      %v657 = vshrl.u32 %v656, 7
      %v658 = vsub.s32 0, %v657
      %v659 = vrot.slane %v654, %v658
      %v661 = vmul.f32 %v652, %v659
      %v662 = vmul.f32 %v653, %v659
      %663 = vst.msk [vmem:[%s604] sm:$0xff] %vm623, %v661
      %664 = vst.msk [vmem:[%s604 + $0x8] sm:$0xff] %vm623, %v662
      %v665 = vld [vmem:[%s580] sm:$0xff]
      %v666 = vld [vmem:[%s580 + $0x8] sm:$0xff]
      %v667 = vld [vmem:[%s9] sm:$0x1]
      %v669 = vlaneseq
      %v670 = vshrl.u32 %v669, 7
      %v671 = vsub.s32 0, %v670
      %v672 = vrot.slane %v667, %v671
      %v674 = vmul.f32 %v665, %v672
      %v675 = vmul.f32 %v666, %v672
      %vm676 = vcmask 261120
      %677 = vst.msk [vmem:[%s610] sm:$0xff] %vm676, %v674
      %678 = vst.msk [vmem:[%s610 + $0x8] sm:$0xff] %vm676, %v675
      %s679 = smul.u32 2, %s26
      %p680 = scmp.lt.s32.totalorder %s679, 3
      %s681 = scalar_select %p680, %s679, 3
      %s682 = smul.addr %s681, 8
      %s683 = scalar_lea.vmem %s10, %s682
      %s684 = smul.u32 2, %s26
      %p685 = scmp.lt.s32.totalorder %s684, 3
      %s686 = scalar_select %p685, %s684, 3
      %s687 = smul.addr %s686, 8
      %s688 = scalar_lea.vmem %s11, %s687
      %s689 = smul.u32 2, %s26
      %p690 = scmp.lt.s32.totalorder %s689, 3
      %s691 = scalar_select %p690, %s689, 3
      %s692 = smul.addr %s691, 8
      %s693 = scalar_lea.vmem %s12, %s692
      %s694 = smul.u32 2, %s26
      %p695 = scmp.lt.s32.totalorder %s694, 3
      %s696 = scalar_select %p695, %s694, 3
      %s697 = smul.addr %s696, 8
      %s698 = scalar_lea.vmem %s13, %s697
      %s699 = smul.u32 2, %s26
      %p700 = scmp.lt.s32.totalorder %s699, 3
      %s701 = scalar_select %p700, %s699, 3
      %s702 = smul.addr %s701, 8
      %s703 = scalar_lea.vmem %s14, %s702
      // Predicated region
      $region61: #{layer_scale_d8.1} parent=59 // pred_check
        %p704 = pneg %p279
      $region62: #{layer_scale_d8.1} parent=59 // pred_check_branch
        %706 = sbr.rel (%p704) target = $region64
      $region63: #{layer_scale_d8.1} parent=59 // pred_region
        %s707 = smul.u32 2, %s26
      $region64: #{layer_scale_d8.1} parent=59 // pred_fallthru
        _
      // Predicated region
      $region65: #{layer_scale_d8.1} parent=59 // pred_check
        %p708 = pneg %p305
      $region66: #{layer_scale_d8.1} parent=59 // pred_check_branch
        %710 = sbr.rel (%p708) target = $region68
      $region67: #{layer_scale_d8.1} parent=59 // pred_region
        %s711 = smul.u32 2, %s26
      $region68: #{layer_scale_d8.1} parent=59 // pred_fallthru
        _
      // Predicated region
      $region69: #{layer_scale_d8.1} parent=59 // pred_check
        %p712 = pneg %p331
      $region70: #{layer_scale_d8.1} parent=59 // pred_check_branch
        %714 = sbr.rel (%p712) target = $region72
      $region71: #{layer_scale_d8.1} parent=59 // pred_region
        %s715 = smul.u32 2, %s26
      $region72: #{layer_scale_d8.1} parent=59 // pred_fallthru
        _
      // Predicated region
      $region73: #{layer_scale_d8.1} parent=59 // pred_check
        %p716 = pneg %p357
      $region74: #{layer_scale_d8.1} parent=59 // pred_check_branch
        %718 = sbr.rel (%p716) target = $region76
      $region75: #{layer_scale_d8.1} parent=59 // pred_region
        %s719 = smul.u32 2, %s26
      $region76: #{layer_scale_d8.1} parent=59 // pred_fallthru
        _
      // Predicated region
      $region77: #{layer_scale_d8.1} parent=59 // pred_check
        %p720 = pneg %p383
      $region78: #{layer_scale_d8.1} parent=59 // pred_check_branch
        %722 = sbr.rel (%p720) target = $region80
      $region79: #{layer_scale_d8.1} parent=59 // pred_region
        %s723 = smul.u32 2, %s26
      $region80: #{layer_scale_d8.1} parent=59 // pred_fallthru
        _
    $region60: #{layer_scale_d8.1} parent=5 // pred_fallthru
      _
    %p724 = scmp.le.s32.totalorder 2, %s21
    // Predicated region
    $region81: #{layer_scale_d8.1} parent=5 // pred_check
      %p725 = pneg %p724
    $region82: #{layer_scale_d8.1} parent=5 // pred_check_branch
      %727 = sbr.rel (%p725) target = $region84
    $region83: #{layer_scale_d8.1} parent=5 // pred_region
      %s728 = ssub.s32 %s21, 2
      // Predicated region
      $region85: #{layer_scale_d8.1} parent=83 // pred_check
        %p729 = pneg %p285
      $region86: #{layer_scale_d8.1} parent=83 // pred_check_branch
        %731 = sbr.rel (%p729) target = $region88
      $region87: #{layer_scale_d8.1} parent=83 // pred_region
        %s732 = smul.u32 2, %s27
        %p733 = scmp.lt.s32.totalorder %s732, 3
        %s734 = scalar_select %p733, %s732, 3
        %s735 = smul.addr %s734, 8
        %s736 = scalar_lea.vmem %s10, %s735
      $region88: #{layer_scale_d8.1} parent=83 // pred_fallthru
        _
      // Predicated region
      $region89: #{layer_scale_d8.1} parent=83 // pred_check
        %p737 = pneg %p311
      $region90: #{layer_scale_d8.1} parent=83 // pred_check_branch
        %739 = sbr.rel (%p737) target = $region92
      $region91: #{layer_scale_d8.1} parent=83 // pred_region
        %s740 = smul.u32 2, %s27
        %p741 = scmp.lt.s32.totalorder %s740, 3
        %s742 = scalar_select %p741, %s740, 3
        %s743 = smul.addr %s742, 8
        %s744 = scalar_lea.vmem %s11, %s743
      $region92: #{layer_scale_d8.1} parent=83 // pred_fallthru
        _
      // Predicated region
      $region93: #{layer_scale_d8.1} parent=83 // pred_check
        %p745 = pneg %p337
      $region94: #{layer_scale_d8.1} parent=83 // pred_check_branch
        %747 = sbr.rel (%p745) target = $region96
      $region95: #{layer_scale_d8.1} parent=83 // pred_region
        %s748 = smul.u32 2, %s27
        %p749 = scmp.lt.s32.totalorder %s748, 3
        %s750 = scalar_select %p749, %s748, 3
        %s751 = smul.addr %s750, 8
        %s752 = scalar_lea.vmem %s12, %s751
      $region96: #{layer_scale_d8.1} parent=83 // pred_fallthru
        _
      // Predicated region
      $region97: #{layer_scale_d8.1} parent=83 // pred_check
        %p753 = pneg %p363
      $region98: #{layer_scale_d8.1} parent=83 // pred_check_branch
        %755 = sbr.rel (%p753) target = $region100
      $region99: #{layer_scale_d8.1} parent=83 // pred_region
        %s756 = smul.u32 2, %s27
        %p757 = scmp.lt.s32.totalorder %s756, 3
        %s758 = scalar_select %p757, %s756, 3
        %s759 = smul.addr %s758, 8
        %s760 = scalar_lea.vmem %s13, %s759
      $region100: #{layer_scale_d8.1} parent=83 // pred_fallthru
        _
      // Predicated region
      $region101: #{layer_scale_d8.1} parent=83 // pred_check
        %p761 = pneg %p389
      $region102: #{layer_scale_d8.1} parent=83 // pred_check_branch
        %763 = sbr.rel (%p761) target = $region104
      $region103: #{layer_scale_d8.1} parent=83 // pred_region
        %s764 = smul.u32 2, %s27
        %p765 = scmp.lt.s32.totalorder %s764, 3
        %s766 = scalar_select %p765, %s764, 3
        %s767 = smul.addr %s766, 8
        %s768 = scalar_lea.vmem %s14, %s767
      $region104: #{layer_scale_d8.1} parent=83 // pred_fallthru
        _
    $region84: #{layer_scale_d8.1} parent=5 // pred_fallthru
      _
  $region6: #{layer_scale_d8.1} parent=0 // loop_footer
    %s25 = sadd.s32 1, %s21
  $region7: #{layer_scale_d8.1} parent=0 // loop_footer_branch
    %20 = sbr.rel target = $region3
  $region8: #{layer_scale_d8.1} parent=0 // loop_exit
    _

</llo_original>
